<compile_context>
chip_gen: v7x
topology: tpu7x:2x2x1
jax: 0.10.0
libtpu: 0.0.40
codegen_flags: <defaults>
</compile_context>

<pallas_src>
import jax
import jax.numpy as jnp
from jax.experimental import pallas as pl
from jax.experimental.pallas import tpu as pltpu


HID = 300       # true fc1 width (PyTorch module)
HID_PAD = 384   # padded to 3 x 128 lanes (zero-filled; exact semantics)


def _round_up(x, m):
    return ((x + m - 1) // m) * m


def _fused_net_kernel(x_ref, w1_ref, b1_ref, w2_ref, b2_ref, w3_ref, b3_ref, o_ref):
    # x_ref:  (TILE_N, L*F)  f32    flattened input tile (streamed per grid step)
    # w1_ref: (L*F, 5)       bf16   conv weight, flattened + transposed
    # b1_ref: (1, 5)         f32
    # w2_ref: (5, 384)       bf16   fc1 weight transposed, lane-padded with zeros
    # b2_ref: (1, 384)       f32    lane-padded with zeros
    # w3_ref: (1, 384)       f32    fc2 weight row, lane-padded with zeros
    # b3_ref: (1, 1)         f32
    # o_ref:  (TILE_N, 1)    f32

    # In-kernel f32 -> bf16 cast (rides the idle VPU; keeps the HBM stream f32
    # and avoids a separate wrapper-side cast pass).
    x = x_ref[...].astype(jnp.bfloat16)

    # conv1 (full-plane kernel == matmul) + bias + ReLU; MXU, f32 accumulation.
    h0 = jnp.dot(x, w1_ref[...], preferred_element_type=jnp.float32) + b1_ref[...]
    h0 = jnp.maximum(h0, 0.0)                                   # (T, 5) f32

    # fc1 + ReLU on the MXU (bf16 operands, f32 accumulate / bias / ReLU).
    h1 = jnp.dot(h0.astype(jnp.bfloat16), w2_ref[...],
                 preferred_element_type=jnp.float32) + b2_ref[...]
    h1 = jnp.maximum(h1, 0.0)                                   # (T, 384) f32; pad cols stay 0

    # fc2 (384 -> 1) on the VPU + XLU instead of the MXU: the MXU cadence is
    # the binding slot in this kernel, the VPU/XLU have slack.  Padded w3
    # lanes are zero, so the lane reduction is exact.  All f32 (no bf16 cast).
    out = jnp.sum(h1 * w3_ref[...], axis=-1, keepdims=True) + b3_ref[...]
    o_ref[...] = out.astype(o_ref.dtype)


def network_forward(x_nchw, params, *, tile_n=None):
    """x_nchw: (N, 1, L, F) float32. Returns (N, 1) float32."""
    n, c, l, f = x_nchw.shape
    assert c == 1, "Conv1d has a single input channel"
    w1, b1, w2, b2, w3, b3 = params
    lf = l * f
    # Guard the conv-as-matmul collapse: kernel must span the full (L, F) plane.
    assert w1.shape == (lf, 5), (w1.shape, (lf, 5))

    # Metadata-only reshape; stays f32 (bf16 cast happens inside the kernel).
    x_flat = x_nchw.reshape(n, lf)

    if tile_n is None:
        # >= 2 balanced tiles whenever the batch allows it, so the "parallel"
        # grid axis feeds both TensorCores on v7x (no-op on v5e/v6e).  Capped
        # at 2048 rows to amortise the ~0.35 us per-grid-step overhead; the
        # per-tile footprint (f32 input block x2 buffers + (2048, 384) f32
        # intermediates) stays ~10 MiB, inside the 32 MiB scoped limit below.
        tile_n = min(2048, max(8, _round_up(pl.cdiv(n, 2), 8)))
    assert tile_n % 8 == 0

    # Ragged batches: no wrapper-side jnp.pad.  Pallas clips the edge block's
    # DMAs; rows are independent, so garbage rows in the last tile only affect
    # out-of-bounds outputs, which are never written back.
    n_tiles = pl.cdiv(n, tile_n)

    flops = 2 * n * (lf * 5 + 5 * HID_PAD + HID_PAD)
    bytes_accessed = (
        n * lf * 4 + n * 4                      # f32 input stream + f32 output column
        + w1.size * 2 + w2.size * 2             # bf16 weights
        + (b1.size + b2.size + w3.size + b3.size) * 4)

    return pl.pallas_call(
        _fused_net_kernel,
        out_shape=jax.ShapeDtypeStruct((n, 1), jnp.float32),
        grid=(n_tiles,),
        in_specs=[
            # Input: streamed per batch tile (double-buffered by Pallas).
            pl.BlockSpec((tile_n, lf), lambda i: (i, 0)),
            # Weights/biases: constant index_map -> fetched once, VMEM-resident.
            pl.BlockSpec((lf, 5), lambda i: (0, 0)),
            pl.BlockSpec((1, 5), lambda i: (0, 0)),
            pl.BlockSpec((5, HID_PAD), lambda i: (0, 0)),
            pl.BlockSpec((1, HID_PAD), lambda i: (0, 0)),
            pl.BlockSpec((1, HID_PAD), lambda i: (0, 0)),
            pl.BlockSpec((1, 1), lambda i: (0, 0)),
        ],
        out_specs=pl.BlockSpec((tile_n, 1), lambda i: (i, 0)),
        compiler_params=pltpu.CompilerParams(
            dimension_semantics=("parallel",),
            vmem_limit_bytes=32 * 1024 * 1024),
        cost_estimate=pl.CostEstimate(
            flops=flops, transcendentals=0, bytes_accessed=bytes_accessed),
    )(x_flat, w1, b1, w2, b2, w3, b3)


def init_params(key, sequence_length, n_features):
    """Deterministic init mirroring the PyTorch module's parameter shapes,
    repacked into kernel-friendly layouts (bf16 MXU weights, f32 VPU weights,
    300 -> 384 zero lane padding — exact)."""
    l, f = sequence_length, n_features
    lin_in_size = 5  # out_channels * 1 (conv output spatial extent collapses to 1)

    k1, k2, k3, k4, k5, k6 = jax.random.split(key, 6)

    # conv1: weight (5, 1, L, F), bias (5,)  -- PyTorch uniform(+-1/sqrt(fan_in))
    bound1 = 1.0 / jnp.sqrt(jnp.float32(l * f))
    conv_w = jax.random.uniform(k1, (5, 1, l, f), jnp.float32, -bound1, bound1)
    conv_b = jax.random.uniform(k2, (5,), jnp.float32, -bound1, bound1)

    # fc1: weight (300, 5), bias (300,)
    bound2 = 1.0 / jnp.sqrt(jnp.float32(lin_in_size))
    fc1_w = jax.random.uniform(k3, (HID, lin_in_size), jnp.float32, -bound2, bound2)
    fc1_b = jax.random.uniform(k4, (HID,), jnp.float32, -bound2, bound2)

    # fc2: weight (1, 300), bias (1,)
    bound3 = 1.0 / jnp.sqrt(jnp.float32(HID))
    fc2_w = jax.random.uniform(k5, (1, HID), jnp.float32, -bound3, bound3)
    fc2_b = jax.random.uniform(k6, (1,), jnp.float32, -bound3, bound3)

    pad = HID_PAD - HID
    w1 = conv_w.reshape(5, l * f).T.astype(jnp.bfloat16)               # (L*F, 5) bf16
    b1 = conv_b.reshape(1, 5)                                          # (1, 5)   f32
    w2 = jnp.pad(fc1_w.T, ((0, 0), (0, pad))).astype(jnp.bfloat16)     # (5, 384) bf16
    b2 = jnp.pad(fc1_b, (0, pad)).reshape(1, HID_PAD)                  # (1, 384) f32
    w3 = jnp.pad(fc2_w, ((0, 0), (0, pad)))                            # (1, 384) f32 (VPU path)
    b3 = fc2_b.reshape(1, 1)                                           # (1, 1)   f32
    return (w1, b1, w2, b2, w3, b3)


def reference_forward(x_nchw, params):
    """Plain-JAX reference mirroring the kernel's precision choices: bf16 MXU
    operands with f32 accumulation for conv/fc1, pure f32 for fc2."""
    n, _, l, f = x_nchw.shape
    w1, b1, w2, b2, w3, b3 = params
    bf = lambda a: a.astype(jnp.bfloat16).astype(jnp.float32)
    x_flat = bf(x_nchw.reshape(n, l * f))
    h0 = jnp.maximum(x_flat @ w1.astype(jnp.float32) + b1, 0.0)
    h1 = jnp.maximum(bf(h0) @ w2.astype(jnp.float32) + b2, 0.0)
    return jnp.sum(h1 * w3, axis=-1, keepdims=True) + b3


if __name__ == "__main__":
    sequence_length = 8
    n_features = 4

    key = jax.random.PRNGKey(0)
    k_params, k_x1, k_x2 = jax.random.split(key, 3)
    params = init_params(k_params, sequence_length, n_features)

    # Small batch: single tile, ragged (2 valid rows in an 8-row block).
    x_small = jax.random.normal(
        k_x1, (2, 1, sequence_length, n_features), jnp.float32)
    out_small = jax.block_until_ready(network_forward(x_small, params))
    ref_small = reference_forward(x_small, params)
    assert out_small.shape == (2, 1), out_small.shape
    assert jnp.allclose(out_small, ref_small, atol=1e-3, rtol=1e-3), (
        out_small, ref_small)

    # Larger batch: (a) default tiling -> 2 balanced "parallel" tiles (v7x
    # megacore path) with a ragged final block; (b) explicit tile_n=128 ->
    # 5-step pipelined grid, ragged last step.
    x_big = jax.random.normal(
        k_x2, (600, 1, sequence_length, n_features), jnp.float32)
    ref_big = reference_forward(x_big, params)

    out_big = jax.block_until_ready(network_forward(x_big, params))
    assert out_big.shape == (600, 1), out_big.shape
    assert jnp.allclose(out_big, ref_big, atol=1e-3, rtol=1e-3)

    out_big2 = jax.block_until_ready(network_forward(x_big, params, tile_n=128))
    assert out_big2.shape == (600, 1), out_big2.shape
    assert jnp.allclose(out_big2, ref_big, atol=1e-3, rtol=1e-3)

    print("KERNEL_OK")
</pallas_src>

<mosaic_0001>
module attributes {stable_mosaic.version = 11 : i64} {
  func.func @_fused_net_kernel(%arg0: i32, %arg1: memref<8x32xf32, #tpu.memory_space<vmem>>, %arg2: memref<32x5xbf16, #tpu.memory_space<vmem>>, %arg3: memref<1x5xf32, #tpu.memory_space<vmem>>, %arg4: memref<5x384xbf16, #tpu.memory_space<vmem>>, %arg5: memref<1x384xf32, #tpu.memory_space<vmem>>, %arg6: memref<1x384xf32, #tpu.memory_space<vmem>>, %arg7: memref<1x1xf32, #tpu.memory_space<vmem>>, %arg8: memref<8x1xf32, #tpu.memory_space<vmem>>) attributes {dimension_semantics = [#tpu.dimension_semantics<parallel>], iteration_bounds = array<i64: 1>, scalar_prefetch = 0 : i64, scratch_operands = 0 : i64, tpu.core_type = #tpu.core_type<tc>, window_params = [{transform_indices = @transform_0, window_bounds = array<i64: 8, 32>}, {pipeline_mode = #tpu.pipeline_mode<synchronous>, transform_indices = @transform_1, window_bounds = array<i64: 32, 5>}, {pipeline_mode = #tpu.pipeline_mode<synchronous>, transform_indices = @transform_2, window_bounds = array<i64: 1, 5>}, {pipeline_mode = #tpu.pipeline_mode<synchronous>, transform_indices = @transform_3, window_bounds = array<i64: 5, 384>}, {pipeline_mode = #tpu.pipeline_mode<synchronous>, transform_indices = @transform_4, window_bounds = array<i64: 1, 384>}, {pipeline_mode = #tpu.pipeline_mode<synchronous>, transform_indices = @transform_5, window_bounds = array<i64: 1, 384>}, {pipeline_mode = #tpu.pipeline_mode<synchronous>, transform_indices = @transform_6, window_bounds = array<i64: 1, 1>}, {transform_indices = @transform_7, window_bounds = array<i64: 8, 1>}]} {
    %c0 = arith.constant 0 : index
    %c0_0 = arith.constant 0 : index
    %0 = vector.load %arg1[%c0, %c0_0] : memref<8x32xf32, #tpu.memory_space<vmem>>, vector<8x32xf32>
    %1 = arith.truncf %0 : vector<8x32xf32> to vector<8x32xbf16>
    %c0_1 = arith.constant 0 : index
    %c0_2 = arith.constant 0 : index
    %2 = vector.load %arg2[%c0_1, %c0_2] : memref<32x5xbf16, #tpu.memory_space<vmem>>, vector<32x5xbf16>
    %cst = arith.constant dense<0.000000e+00> : vector<8x5xf32>
    %3 = tpu.matmul %1, %2, %cst {dimension_numbers = #tpu.dot_dimension_numbers<[1], [0], [0], [1], [0, 0, 1, 1], [], []>} : vector<8x32xbf16>, vector<32x5xbf16>, vector<8x5xf32> -> vector<8x5xf32>
    %c0_3 = arith.constant 0 : index
    %c0_4 = arith.constant 0 : index
    %4 = vector.load %arg3[%c0_3, %c0_4] : memref<1x5xf32, #tpu.memory_space<vmem>>, vector<1x5xf32>
    %5 = vector.broadcast %4 : vector<1x5xf32> to vector<8x5xf32>
    %6 = arith.addf %3, %5 : vector<8x5xf32>
    %cst_5 = arith.constant 0.000000e+00 : f32
    %7 = vector.broadcast %cst_5 : f32 to vector<8x5xf32>
    %8 = arith.maximumf %6, %7 : vector<8x5xf32>
    %9 = arith.truncf %8 : vector<8x5xf32> to vector<8x5xbf16>
    %c0_6 = arith.constant 0 : index
    %c0_7 = arith.constant 0 : index
    %10 = vector.load %arg4[%c0_6, %c0_7] : memref<5x384xbf16, #tpu.memory_space<vmem>>, vector<5x384xbf16>
    %cst_8 = arith.constant dense<0.000000e+00> : vector<8x384xf32>
    %11 = tpu.matmul %9, %10, %cst_8 {dimension_numbers = #tpu.dot_dimension_numbers<[1], [0], [0], [1], [0, 0, 1, 1], [], []>} : vector<8x5xbf16>, vector<5x384xbf16>, vector<8x384xf32> -> vector<8x384xf32>
    %c0_9 = arith.constant 0 : index
    %c0_10 = arith.constant 0 : index
    %12 = vector.load %arg5[%c0_9, %c0_10] : memref<1x384xf32, #tpu.memory_space<vmem>>, vector<1x384xf32>
    %13 = vector.broadcast %12 : vector<1x384xf32> to vector<8x384xf32>
    %14 = arith.addf %11, %13 : vector<8x384xf32>
    %cst_11 = arith.constant 0.000000e+00 : f32
    %15 = vector.broadcast %cst_11 : f32 to vector<8x384xf32>
    %16 = arith.maximumf %14, %15 : vector<8x384xf32>
    %c0_12 = arith.constant 0 : index
    %c0_13 = arith.constant 0 : index
    %17 = vector.load %arg6[%c0_12, %c0_13] : memref<1x384xf32, #tpu.memory_space<vmem>>, vector<1x384xf32>
    %18 = vector.broadcast %17 : vector<1x384xf32> to vector<8x384xf32>
    %19 = arith.mulf %16, %18 : vector<8x384xf32>
    %cst_14 = arith.constant dense<0.000000e+00> : vector<8xf32>
    %20 = vector.multi_reduction <add>, %19, %cst_14 [1] : vector<8x384xf32> to vector<8xf32>
    %21 = vector.shape_cast %20 : vector<8xf32> to vector<8x1xf32>
    %c0_15 = arith.constant 0 : index
    %c0_16 = arith.constant 0 : index
    %22 = vector.load %arg7[%c0_15, %c0_16] : memref<1x1xf32, #tpu.memory_space<vmem>>, vector<1x1xf32>
    %23 = vector.broadcast %22 : vector<1x1xf32> to vector<8x1xf32>
    %24 = arith.addf %21, %23 : vector<8x1xf32>
    %c0_17 = arith.constant 0 : index
    %c0_18 = arith.constant 0 : index
    %25 = vector.load %arg8[%c0_17, %c0_18] : memref<8x1xf32, #tpu.memory_space<vmem>>, vector<8x1xf32>
    tpu.vector_store %arg8[%c0_17, %c0_18], %24 {strides = array<i32>} : memref<8x1xf32, #tpu.memory_space<vmem>>, vector<8x1xf32>,
    return
  }
  func.func @transform_0(%arg0: i32) -> (i32, i32) {
    %c0_i32 = arith.constant 0 : i32
    %c0_i32_0 = arith.constant 0 : i32
    return %arg0, %c0_i32 : i32, i32
  }
  func.func @transform_1(%arg0: i32) -> (i32, i32) {
    %c0_i32 = arith.constant 0 : i32
    %c0_i32_0 = arith.constant 0 : i32
    %c0_i32_1 = arith.constant 0 : i32
    return %c0_i32, %c0_i32_0 : i32, i32
  }
  func.func @transform_2(%arg0: i32) -> (i32, i32) {
    %c0_i32 = arith.constant 0 : i32
    %c0_i32_0 = arith.constant 0 : i32
    %c0_i32_1 = arith.constant 0 : i32
    return %c0_i32, %c0_i32_0 : i32, i32
  }
  func.func @transform_3(%arg0: i32) -> (i32, i32) {
    %c0_i32 = arith.constant 0 : i32
    %c0_i32_0 = arith.constant 0 : i32
    %c0_i32_1 = arith.constant 0 : i32
    return %c0_i32, %c0_i32_0 : i32, i32
  }
  func.func @transform_4(%arg0: i32) -> (i32, i32) {
    %c0_i32 = arith.constant 0 : i32
    %c0_i32_0 = arith.constant 0 : i32
    %c0_i32_1 = arith.constant 0 : i32
    return %c0_i32, %c0_i32_0 : i32, i32
  }
  func.func @transform_5(%arg0: i32) -> (i32, i32) {
    %c0_i32 = arith.constant 0 : i32
    %c0_i32_0 = arith.constant 0 : i32
    %c0_i32_1 = arith.constant 0 : i32
    return %c0_i32, %c0_i32_0 : i32, i32
  }
  func.func @transform_6(%arg0: i32) -> (i32, i32) {
    %c0_i32 = arith.constant 0 : i32
    %c0_i32_0 = arith.constant 0 : i32
    %c0_i32_1 = arith.constant 0 : i32
    return %c0_i32, %c0_i32_0 : i32, i32
  }
  func.func @transform_7(%arg0: i32) -> (i32, i32) {
    %c0_i32 = arith.constant 0 : i32
    %c0_i32_0 = arith.constant 0 : i32
    return %arg0, %c0_i32 : i32, i32
  }
}

</mosaic_0001>

<llo_original>
// kernel: tpu_custom_call.1
$region0: #{tpu_custom_call.1}
  #allocation0 [shape = 'u32[]', space=smem, size = 0x4, offset = 0x4, fixed_abs, tag = 'smem constant byte address 0x4 - core index']
  #allocation1 [shape = 'u32[144,128]{1,0:T(1,128)}', space=vmem, size = 0x12000, scoped, tag = 'internal scratch']
  #allocation2 [shape = 'f32[1,1]{1,0:T(1,128)S(1)}', space=vmem, size = 0x200, scoped, tag = 'scoped memory for tpu_custom_call.1']
  %s0 = inlined_call_operand.vmem [shape: f32[2,32], index: 0, kind: input, shape index: {}]
  %s1 = inlined_call_operand.vmem [shape: bf16[32,5], index: 1, kind: input, shape index: {}]
  %s2 = inlined_call_operand.vmem [shape: f32[1,5], index: 2, kind: input, shape index: {}]
  %s3 = inlined_call_operand.vmem [shape: bf16[5,384], index: 3, kind: input, shape index: {}]
  %s4 = inlined_call_operand.vmem [shape: f32[1,384], index: 4, kind: input, shape index: {}]
  %s5 = inlined_call_operand.vmem [shape: f32[1,384], index: 5, kind: input, shape index: {}]
  %s6 = inlined_call_operand.<no memory space> [shape: f32[1,1], index: 6, kind: input, shape index: {}]
  %s7 = inlined_call_operand.vmem [shape: f32[2,1], index: 7, kind: output, shape index: {}]
  %s8 = sld [smem:[#allocation0]]
  $region68: #{tpu_custom_call.1} parent=0
    _
  %s10 = ssub.s32 1, %s8
  %s11 = scalar_select 0, %s10, %s8
  %v12 = vstv %s6
  %13 = vst [vmem:[#allocation2] sm:$0x1] %v12
  $region1: #{tpu_custom_call.1} parent=0
    #allocation3 [shape = 'u8[4096]{0}', space=vmem, size = 0x1000, scoped, tag = 'output window, operand 0, single buffered']
    // Predicated region
    $region2: #{tpu_custom_call.1} parent=1 // pred_check
      _
    $region3: #{tpu_custom_call.1} parent=1 // pred_check_branch
      %15 = sbr.rel (0) target = $region5
    $region4: #{tpu_custom_call.1} parent=1 // pred_region
      _
    $region5: #{tpu_custom_call.1} parent=1 // pred_fallthru
      _
    // Predicated region
    $region6: #{tpu_custom_call.1} parent=1 // pred_check
      _
    $region7: #{tpu_custom_call.1} parent=1 // pred_check_branch
      %17 = sbr.rel (0) target = $region9
    $region8: #{tpu_custom_call.1} parent=1 // pred_region
      _
    $region9: #{tpu_custom_call.1} parent=1 // pred_fallthru
      _
    // Predicated region
    $region10: #{tpu_custom_call.1} parent=1 // pred_check
      _
    $region11: #{tpu_custom_call.1} parent=1 // pred_check_branch
      %19 = sbr.rel (0) target = $region13
    $region12: #{tpu_custom_call.1} parent=1 // pred_region
      _
    $region13: #{tpu_custom_call.1} parent=1 // pred_fallthru
      _
    // Predicated region
    $region14: #{tpu_custom_call.1} parent=1 // pred_check
      _
    $region15: #{tpu_custom_call.1} parent=1 // pred_check_branch
      %21 = sbr.rel (0) target = $region17
    $region16: #{tpu_custom_call.1} parent=1 // pred_region
      _
    $region17: #{tpu_custom_call.1} parent=1 // pred_fallthru
      _
    // Predicated region
    $region18: #{tpu_custom_call.1} parent=1 // pred_check
      _
    $region19: #{tpu_custom_call.1} parent=1 // pred_check_branch
      %23 = sbr.rel (0) target = $region21
    $region20: #{tpu_custom_call.1} parent=1 // pred_region
      _
    $region21: #{tpu_custom_call.1} parent=1 // pred_fallthru
      _
    // Predicated region
    $region22: #{tpu_custom_call.1} parent=1 // pred_check
      _
    $region23: #{tpu_custom_call.1} parent=1 // pred_check_branch
      %25 = sbr.rel (0) target = $region25
    $region24: #{tpu_custom_call.1} parent=1 // pred_region
      _
    $region25: #{tpu_custom_call.1} parent=1 // pred_fallthru
      _
    // Predicated region
    $region26: #{tpu_custom_call.1} parent=1 // pred_check
      _
    $region27: #{tpu_custom_call.1} parent=1 // pred_check_branch
      %27 = sbr.rel (0) target = $region29
    $region28: #{tpu_custom_call.1} parent=1 // pred_region
      _
    $region29: #{tpu_custom_call.1} parent=1 // pred_fallthru
      _
    %v29 = vld [vmem:[%s0] sm:$0xff]
    %v30 = vpack.c.bf16 %v29, %v29
    %v31 = vld [vmem:[%s1] sm:$0xf]
    %v32 = vld [vmem:[%s1 + $0x4] sm:$0xf]
    %v33 = vld [vmem:[%s1 + $0x8] sm:$0xf]
    %v34 = vld [vmem:[%s1 + $0xc] sm:$0xf]
    %v35 = vld [vmem:[%s2] sm:$0x1]
    %v37 = vlaneseq
    %v38 = vshrl.u32 %v37, 7
    %v39 = vsub.s32 0, %v38
    %v40 = vrot.slane %v35, %v39
    %v46 = vunpack.c.l.b16 %v31
    %v47 = vunpack.c.l.b16 %v32
    %v48 = vunpack.c.l.b16 %v33
    %v49 = vunpack.c.l.b16 %v34
    %v50 = vpack.c.b16 %v47, %v46
    %v51 = vpack.c.b16 %v49, %v48
    %vm54 = vcmask 261120
    %v56 = vsel %vm54, %v30, 0
    %58 = vmatprep.subr.bf16.mxu0 0
    %59 = vmatpush1.bf16.msra.mxu0 %v50
    %60 = vmatprep.subr.bf16.mxu0 0
    %61 = vmatpush1.bf16.msra.mxu0 %v51
    %62 = vmatprep.subr.bf16.mxu0 0
    %63 = vmatpush1.bf16.msra.mxu0 0
    %64 = vmatprep.subr.bf16.mxu0 0
    %65 = vmatpush1.bf16.msra.mxu0 0
    %66 = vmatprep.subr.bf16.mxu0 0
    %67 = vmatpush1.bf16.msra.mxu0 0
    %68 = vmatprep.subr.bf16.mxu0 0
    %69 = vmatpush1.bf16.msra.mxu0 0
    %70 = vmatprep.subr.bf16.mxu0 0
    %71 = vmatpush1.bf16.msra.mxu0 0
    %72 = vmatprep.subr.bf16.mxu0 0
    %73 = vmatpush1.bf16.msra.mxu0 0
    %74 = vmatprep.subr.bf16.mxu0 0
    %75 = vmatpush1.bf16.msra.mxu0 0
    %76 = vmatprep.subr.bf16.mxu0 0
    %77 = vmatpush1.bf16.msra.mxu0 0
    %78 = vmatprep.subr.bf16.mxu0 0
    %79 = vmatpush1.bf16.msra.mxu0 0
    %80 = vmatprep.subr.bf16.mxu0 0
    %81 = vmatpush1.bf16.msra.mxu0 0
    %82 = vmatprep.subr.bf16.mxu0 0
    %83 = vmatpush1.bf16.msra.mxu0 0
    %84 = vmatprep.subr.bf16.mxu0 0
    %85 = vmatpush1.bf16.msra.mxu0 0
    %86 = vmatprep.subr.bf16.mxu0 0
    %87 = vmatpush1.bf16.msra.mxu0 0
    %88 = vmatprep.subr.bf16.mxu0 0
    %89 = vmatpush1.bf16.msra.mxu0 0
    %90 = vmatprep.mubr.bf16.mxu0 0
    %91 = vmatmul.mubr.bf16.gmra.mrb[0].mxu0 %v56
    %v92 = vpop.f32.mrb[0].mxu0
    %v93 = vadd.f32 %v40, %v92
    %v94 = vpop.f32.mrb[0].mxu0
    %v95 = vpop.f32.mrb[0].mxu0
    %v96 = vpop.f32.mrb[0].mxu0
    %97 = vdwg.mxu0
    %v98 = vmax.f32 %v93, 0.0
    %v99 = vpack.c.bf16 %v98, %v98
    %v100 = vld [vmem:[%s3] sm:$0x77]
    %v101 = vld [vmem:[%s3 + $0x8] sm:$0x7]
    %v102 = vld [vmem:[%s4] sm:$0x7]
    %v104 = vlaneseq
    %v105 = vshrl.u32 %v104, 7
    %v106 = vsub.s32 0, %v105
    %v107 = vrot.slane %v102, %v106
    %v108 = vlaneseq
    %v109 = vshrl.u32 %v108, 7
    %v110 = vsub.s32 1, %v109
    %v111 = vrot.slane %v102, %v110
    %v112 = vlaneseq
    %v113 = vshrl.u32 %v112, 7
    %v114 = vsub.s32 2, %v113
    %v115 = vrot.slane %v102, %v114
    %v121 = vunpack.c.l.b16 %v100
    %v122 = vunpack.c.h.b16 %v100
    %v123 = vunpack.c.l.b16 %v101
    %v124 = vpack.c.b16 %v121, %v121
    %v125 = vpack.c.b16 %v122, %v122
    %v126 = vpack.c.b16 %v123, %v123
    %vm127 = vcmask 39936
    %v129 = vsel %vm127, %v99, 0
    %vm131 = vcmask 1041408
    %vm132 = vcmask 1042432
    %v133 = vsel %vm131, 4294967295, 65535
    %v134 = vsel %vm132, %v133, 0
    %v136 = vand.u32 %v124, %v134
    %v139 = vand.u32 %v125, %v134
    %v142 = vand.u32 %v126, %v134
    %144 = vmatprep.subr.bf16.mxu0 %v139
    %145 = vmatpush1.bf16.msra.mxu0 %v136
    %146 = vmatprep.subr.bf16.mxu0 0
    %147 = vmatpush1.bf16.msra.mxu0 0
    %148 = vmatprep.subr.bf16.mxu0 0
    %149 = vmatpush1.bf16.msra.mxu0 0
    %150 = vmatprep.subr.bf16.mxu0 0
    %151 = vmatpush1.bf16.msra.mxu0 0
    %152 = vmatprep.subr.bf16.mxu0 0
    %153 = vmatpush1.bf16.msra.mxu0 0
    %154 = vmatprep.subr.bf16.mxu0 0
    %155 = vmatpush1.bf16.msra.mxu0 0
    %156 = vmatprep.subr.bf16.mxu0 0
    %157 = vmatpush1.bf16.msra.mxu0 0
    %158 = vmatprep.subr.bf16.mxu0 0
    %159 = vmatpush1.bf16.msra.mxu0 0
    %160 = vmatprep.subr.bf16.mxu0 0
    %161 = vmatpush1.bf16.msra.mxu0 0
    %162 = vmatprep.subr.bf16.mxu0 0
    %163 = vmatpush1.bf16.msra.mxu0 0
    %164 = vmatprep.subr.bf16.mxu0 0
    %165 = vmatpush1.bf16.msra.mxu0 0
    %166 = vmatprep.subr.bf16.mxu0 0
    %167 = vmatpush1.bf16.msra.mxu0 0
    %168 = vmatprep.subr.bf16.mxu0 0
    %169 = vmatpush1.bf16.msra.mxu0 0
    %170 = vmatprep.subr.bf16.mxu0 0
    %171 = vmatpush1.bf16.msra.mxu0 0
    %172 = vmatprep.subr.bf16.mxu0 0
    %173 = vmatpush1.bf16.msra.mxu0 0
    %174 = vmatprep.subr.bf16.mxu0 0
    %175 = vmatpush1.bf16.msra.mxu0 0
    %176 = vmatprep.mubr.bf16.mxu0 0
    %177 = vmatmul.mubr.bf16.gmra.mrb[0].mxu0 %v129
    %v178 = vpop.f32.mrb[0].mxu0
    %v179 = vadd.f32 %v107, %v178
    %v180 = vpop.f32.mrb[0].mxu0
    %v181 = vadd.f32 %v111, %v180
    %v182 = vpop.f32.mrb[0].mxu0
    %v183 = vpop.f32.mrb[0].mxu0
    %184 = vdwg.mxu0
    %185 = vmatprep.subr.bf16.mxu0 0
    %186 = vmatpush1.bf16.msra.mxu0 %v142
    %187 = vmatprep.subr.bf16.mxu0 0
    %188 = vmatpush1.bf16.msra.mxu0 0
    %189 = vmatprep.subr.bf16.mxu0 0
    %190 = vmatpush1.bf16.msra.mxu0 0
    %191 = vmatprep.subr.bf16.mxu0 0
    %192 = vmatpush1.bf16.msra.mxu0 0
    %193 = vmatprep.subr.bf16.mxu0 0
    %194 = vmatpush1.bf16.msra.mxu0 0
    %195 = vmatprep.subr.bf16.mxu0 0
    %196 = vmatpush1.bf16.msra.mxu0 0
    %197 = vmatprep.subr.bf16.mxu0 0
    %198 = vmatpush1.bf16.msra.mxu0 0
    %199 = vmatprep.subr.bf16.mxu0 0
    %200 = vmatpush1.bf16.msra.mxu0 0
    %201 = vmatprep.subr.bf16.mxu0 0
    %202 = vmatpush1.bf16.msra.mxu0 0
    %203 = vmatprep.subr.bf16.mxu0 0
    %204 = vmatpush1.bf16.msra.mxu0 0
    %205 = vmatprep.subr.bf16.mxu0 0
    %206 = vmatpush1.bf16.msra.mxu0 0
    %207 = vmatprep.subr.bf16.mxu0 0
    %208 = vmatpush1.bf16.msra.mxu0 0
    %209 = vmatprep.subr.bf16.mxu0 0
    %210 = vmatpush1.bf16.msra.mxu0 0
    %211 = vmatprep.subr.bf16.mxu0 0
    %212 = vmatpush1.bf16.msra.mxu0 0
    %213 = vmatprep.subr.bf16.mxu0 0
    %214 = vmatpush1.bf16.msra.mxu0 0
    %215 = vmatprep.subr.bf16.mxu0 0
    %216 = vmatpush1.bf16.msra.mxu0 0
    %217 = vmatprep.mubr.bf16.mxu0 0
    %218 = vmatmul.mubr.bf16.gmra.mrb[0].mxu0 %v129
    %v219 = vpop.f32.mrb[0].mxu0
    %v220 = vadd.f32 %v115, %v219
    %v221 = vpop.f32.mrb[0].mxu0
    %v222 = vpop.f32.mrb[0].mxu0
    %v223 = vpop.f32.mrb[0].mxu0
    %224 = vdwg.mxu0
    %v225 = vmax.f32 %v179, 0.0
    %v226 = vmax.f32 %v181, 0.0
    %v227 = vmax.f32 %v220, 0.0
    %v228 = vld [vmem:[%s5] sm:$0x7]
    %v230 = vlaneseq
    %v231 = vshrl.u32 %v230, 7
    %v232 = vsub.s32 0, %v231
    %v233 = vrot.slane %v228, %v232
    %v234 = vlaneseq
    %v235 = vshrl.u32 %v234, 7
    %v236 = vsub.s32 1, %v235
    %v237 = vrot.slane %v228, %v236
    %v238 = vlaneseq
    %v239 = vshrl.u32 %v238, 7
    %v240 = vsub.s32 2, %v239
    %v241 = vrot.slane %v228, %v240
    %v245 = vmul.f32 %v225, %v233
    %v246 = vmul.f32 %v226, %v237
    %v247 = vmul.f32 %v227, %v241
    %v248 = vadd.f32 %v245, %v246
    %v249 = vadd.f32 %v248, %v247
    %250 = vadd.xlane.f32.xlu0 %v249
    %v251 = vpop.xlane.xlu0 %250
    %v252 = vld [vmem:[#allocation2] sm:$0x1]
    %v254 = vlaneseq
    %v255 = vshrl.u32 %v254, 7
    %v256 = vsub.s32 0, %v255
    %v257 = vrot.slane %v252, %v256
    %v259 = vadd.f32 %v251, %v257
    %vm260 = vcmask 7168
    %261 = vst.msk [vmem:[#allocation3] sm:$0xff] %vm260, %v259
    // Predicated region
    $region30: #{tpu_custom_call.1} parent=1 // pred_check
      _
    $region31: #{tpu_custom_call.1} parent=1 // pred_check_branch
      %263 = sbr.rel (0) target = $region33
    $region32: #{tpu_custom_call.1} parent=1 // pred_region
      // Predicated region
      $region34: #{tpu_custom_call.1} parent=32 // pred_check
        _
      $region35: #{tpu_custom_call.1} parent=32 // pred_check_branch
        %265 = sbr.rel (0) target = $region37
      $region36: #{tpu_custom_call.1} parent=32 // pred_region
        // Predicated region
        $region38: #{tpu_custom_call.1} parent=36 // pred_check
          _
        $region39: #{tpu_custom_call.1} parent=36 // pred_check_branch
          %267 = sbr.rel target = $region41
        $region40: #{tpu_custom_call.1} parent=36 // pred_region
          // Predicated region
          $region53: #{tpu_custom_call.1} parent=40 // pred_check
            _
          $region54: #{tpu_custom_call.1} parent=40 // pred_check_branch
            %282 = sbr.rel (0) target = $region56
          $region55: #{tpu_custom_call.1} parent=40 // pred_region
            loop: start=0, step=1, limit=1
            $region57: #{tpu_custom_call.1} parent=55 // loop_pre_header
              _
            $region58: #{tpu_custom_call.1} parent=55 // loop_header
              %s285 = sphi 0, %s289
              %p286 = scmp.ge.s32.totalorder %s285, 1
              %s290 = sphi [#allocation3], [#allocation3]
              %s291 = sphi %s7, %s7
            $region59: #{tpu_custom_call.1} parent=55 // loop_header_branch
              %288 = sbr.rel (%p286) target = $region63
            $region60: #{tpu_custom_call.1} parent=55 // loop_body
              %v292 = vld [vmem:[%s290] sm:$0x3]
              %293 = vst [vmem:[%s291] sm:$0x3] %v292
            $region61: #{tpu_custom_call.1} parent=55 // loop_footer
              %s289 = sadd.s32 1, %s285
            $region62: #{tpu_custom_call.1} parent=55 // loop_footer_branch
              %284 = sbr.rel target = $region58
            $region63: #{tpu_custom_call.1} parent=55 // loop_exit
              _
          $region56: #{tpu_custom_call.1} parent=40 // pred_fallthru
            _
        $region41: #{tpu_custom_call.1} parent=36 // pred_fallthru
          _
        // Predicated region
        $region42: #{tpu_custom_call.1} parent=36 // pred_check
          _
        $region43: #{tpu_custom_call.1} parent=36 // pred_check_branch
          %269 = sbr.rel (0) target = $region45
        $region44: #{tpu_custom_call.1} parent=36 // pred_region
          loop: start=0, step=1, limit=1
          $region46: #{tpu_custom_call.1} parent=44 // loop_pre_header
            _
          $region47: #{tpu_custom_call.1} parent=44 // loop_header
            %s272 = sphi 0, %s276
            %p273 = scmp.ge.s32.totalorder %s272, 1
            %s277 = sphi [#allocation3], [#allocation3]
            %s278 = sphi %s7, %s7
          $region48: #{tpu_custom_call.1} parent=44 // loop_header_branch
            %275 = sbr.rel (%p273) target = $region52
          $region49: #{tpu_custom_call.1} parent=44 // loop_body
            %v279 = vld [vmem:[%s277] sm:$0x3]
            %280 = vst [vmem:[%s278] sm:$0x3] %v279
          $region50: #{tpu_custom_call.1} parent=44 // loop_footer
            %s276 = sadd.s32 1, %s272
          $region51: #{tpu_custom_call.1} parent=44 // loop_footer_branch
            %271 = sbr.rel target = $region47
          $region52: #{tpu_custom_call.1} parent=44 // loop_exit
            _
        $region45: #{tpu_custom_call.1} parent=36 // pred_fallthru
          _
      $region37: #{tpu_custom_call.1} parent=32 // pred_fallthru
        _
      %294 = vnop
    $region33: #{tpu_custom_call.1} parent=1 // pred_fallthru
      _
    // Predicated region
    $region64: #{tpu_custom_call.1} parent=1 // pred_check
      _
    $region65: #{tpu_custom_call.1} parent=1 // pred_check_branch
      %296 = sbr.rel (0) target = $region67
    $region66: #{tpu_custom_call.1} parent=1 // pred_region
      _
    $region67: #{tpu_custom_call.1} parent=1 // pred_fallthru
      _

</llo_original>
